<compile_context>
chip_gen: v7x
topology: tpu7x:2x2x1
jax: 0.10.0
libtpu: 0.0.40
codegen_flags: <defaults>
</compile_context>

<pallas_src>
import functools

import jax
import jax.numpy as jnp
from jax.experimental import pallas as pl
from jax.experimental.pallas import tpu as pltpu


def _distill_kl_kernel(invt_ref, ys_ref, yt_ref, out_ref, *,
                       batch, block_rows, use_bf16_exp):
    """Process one (block_rows, C) tile of logits -> one lane-dense partial sum."""
    inv_t = invt_ref[0]  # scalar 1/T from SMEM

    ys = ys_ref[...].astype(jnp.float32) * inv_t
    yt = yt_ref[...].astype(jnp.float32) * inv_t

    # Only compiled in when B % block_rows != 0 (tile picker prefers dividing tb).
    ragged = (batch % block_rows) != 0
    if ragged:
        row0 = pl.program_id(0) * block_rows
        rows = row0 + jax.lax.broadcasted_iota(jnp.int32, (block_rows, 1), 0)
        valid = rows < batch
        # Zero out padded rows before any transcendental touches them.
        ys = jnp.where(valid, ys, 0.0)
        yt = jnp.where(valid, yt, 0.0)

    # Stabilized shifted logits.
    ys_sh = ys - jnp.max(ys, axis=-1, keepdims=True)
    yt_sh = yt - jnp.max(yt, axis=-1, keepdims=True)

    if use_bf16_exp:
        # v7x bf16 path: EUP (exp) is the binding slot; bf16 exp runs ~2x faster.
        # Sums are still accumulated in f32.
        exp_s = jnp.exp(ys_sh.astype(jnp.bfloat16)).astype(jnp.float32)
        exp_t = jnp.exp(yt_sh.astype(jnp.bfloat16)).astype(jnp.float32)
    else:
        exp_s = jnp.exp(ys_sh)
        exp_t = jnp.exp(yt_sh)

    z_s = jnp.sum(exp_s, axis=-1, keepdims=True)   # (TB, 1)
    z_t = jnp.sum(exp_t, axis=-1, keepdims=True)   # (TB, 1)

    # sum_c p_t*(log p_t - log p_s) = (sum_c exp_t*(yt_sh-ys_sh))/z_t + log z_s - log z_t
    num = jnp.sum(exp_t * (yt_sh - ys_sh), axis=-1, keepdims=True)
    row_loss = num / z_t + jnp.log(z_s) - jnp.log(z_t)          # (TB, 1)
    if ragged:
        row_loss = jnp.where(valid, row_loss, 0.0)

    partial = jnp.sum(row_loss)                                  # scalar per tile
    # Lane-dense full-vreg store; wrapper reads [tile, 0, 0].
    out_ref[...] = jnp.broadcast_to(partial, out_ref.shape).astype(jnp.float32)


def _vmem_capacity_bytes():
    """Physical VMEM per TensorCore; conservative fallback if the query fails."""
    try:
        return int(pltpu.get_tpu_info().vmem_capacity_bytes)
    except Exception:
        return 64 << 20  # v7x-sized (safe lower bound for budgeting)


def _tile_plan(batch, classes, s_itemsize, t_itemsize):
    """Pick (block_rows, vmem_budget, row_multiple), generation-aware."""
    vmem_cap = _vmem_capacity_bytes()
    # ~70% of physical VMEM: ~45 MiB on v7x (64 MiB), ~90 MiB on v5e/v6e (128 MiB).
    vmem_budget = min(int(vmem_cap * 0.70), 100 << 20)

    # Bigger per-input tile target on 128 MiB-VMEM chips (fewer grid steps,
    # same HBM traffic); 2 MiB target on 64 MiB chips.
    target_tile_bytes = (6 << 20) if vmem_cap > (96 << 20) else (2 << 20)

    # Whole packed vregs: 8 sublanes for 4B, 16 for 2B, 32 for 1B dtypes.
    min_itemsize = max(1, min(s_itemsize, t_itemsize))
    row_multiple = max(8, 32 // min_itemsize)

    if batch <= row_multiple:
        return batch, vmem_budget, row_multiple

    # Rows from the per-input byte target (no artificial row cap).
    rows_target = target_tile_bytes // max(1, classes * max(s_itemsize, t_itemsize))
    # Rows that fit the VMEM budget: 2 double-buffered input tiles + ~6 live f32 temps.
    per_row_bytes = 2 * classes * (s_itemsize + t_itemsize) + 6 * classes * 4
    rows_fit = (vmem_budget - (4 << 20)) // max(1, per_row_bytes)

    rows = min(rows_target, rows_fit, batch)
    rows = max(row_multiple, (rows // row_multiple) * row_multiple)
    if rows >= batch:
        return batch, vmem_budget, row_multiple

    # Prefer a tb that divides B exactly (compiles out the ragged mask on every
    # tile) as long as it doesn't shrink the tile by more than 2x.
    cand = rows
    best = None
    while cand >= row_multiple:
        if batch % cand == 0:
            best = cand
            break
        cand -= row_multiple
    if best is not None and best * 2 >= rows:
        rows = best
    return rows, vmem_budget, row_multiple


def distill_kl(y_s, y_t, temp, *, block_rows=None, bf16_exp=False):
    """Pallas TPU implementation of DistillKL.forward(y_s, y_t, temp)."""
    y_s = jnp.asarray(y_s)   # keep native dtype (bf16 stays bf16 -> half HBM traffic)
    y_t = jnp.asarray(y_t)
    assert y_s.ndim == 2 and y_s.shape == y_t.shape
    B, C = y_s.shape

    t = jnp.asarray(temp, jnp.float32).reshape(())
    inv_t = jnp.reshape(1.0 / t, (1,))            # scalar 1/T, lives in SMEM

    s_is = jnp.dtype(y_s.dtype).itemsize
    t_is = jnp.dtype(y_t.dtype).itemsize

    tb, vmem_budget, _row_mult = _tile_plan(B, C, s_is, t_is)
    if block_rows is not None:
        tb = int(block_rows)
    if tb >= B:
        tb = B
    assert tb == B or tb % 8 == 0, "block_rows must be a multiple of 8 (or >= B)"
    num_tiles = pl.cdiv(B, tb)

    # VMEM request derived from the real live set:
    #   2 pipeline buffers per input (native dtype) + ~6 live f32 tile temporaries
    #   + double-buffered (8,128) f32 output block + fixed headroom.
    in_buf_bytes = 2 * tb * C * s_is + 2 * tb * C * t_is
    f32_temp_bytes = 6 * tb * C * 4
    out_buf_bytes = 2 * 8 * 128 * 4
    needed = in_buf_bytes + f32_temp_bytes + out_buf_bytes + (2 << 20)
    vmem_limit = int(min(vmem_budget, max(16 << 20, needed)))

    kernel = functools.partial(
        _distill_kl_kernel, batch=B, block_rows=tb, use_bf16_exp=bool(bf16_exp))

    cost = pl.CostEstimate(
        flops=12 * B * C,
        transcendentals=2 * B * C + 2 * B,
        bytes_accessed=B * C * (s_is + t_is) + num_tiles * 8 * 128 * 4,
    )

    partials = pl.pallas_call(
        kernel,
        out_shape=jax.ShapeDtypeStruct((num_tiles, 8, 128), jnp.float32),
        grid=(num_tiles,),
        in_specs=[
            pl.BlockSpec(memory_space=pltpu.SMEM),        # 1/T scalar
            pl.BlockSpec((tb, C), lambda i: (i, 0)),      # student logits tile
            pl.BlockSpec((tb, C), lambda i: (i, 0)),      # teacher logits tile
        ],
        out_specs=pl.BlockSpec((1, 8, 128), lambda i: (i, 0, 0)),
        compiler_params=pltpu.CompilerParams(
            dimension_semantics=("parallel",),            # lets v7x use both TCs
            vmem_limit_bytes=vmem_limit,
        ),
        cost_estimate=cost,
    )(inv_t, y_s, y_t)

    # Final (tiny) cross-tile reduction + exact T^2 / B scaling in the wrapper.
    return jnp.sum(partials[:, 0, 0]) * (t * t) / jnp.float32(B)


def _reference(y_s, y_t, temp):
    T = jnp.float32(temp)
    ys = jnp.asarray(y_s, jnp.float32) / T
    yt = jnp.asarray(y_t, jnp.float32) / T
    log_p_s = jax.nn.log_softmax(ys, axis=1)
    p_t = jax.nn.softmax(yt, axis=1)
    log_p_t = jax.nn.log_softmax(yt, axis=1)
    B = y_s.shape[0]
    return jnp.sum(p_t * (log_p_t - log_p_s)) / B * T * T


if __name__ == "__main__":
    key = jax.random.PRNGKey(0)
    k1, k2, k3, k4, k5, k6 = jax.random.split(key, 6)
    temp = jnp.float32(4.0)

    # Small f32 case (matches the PyTorch module's (batch, classes) convention).
    B, C = 8, 32
    y_s = jax.random.normal(k1, (B, C), dtype=jnp.float32) * 2.0
    y_t = jax.random.normal(k2, (B, C), dtype=jnp.float32) * 2.0
    loss = distill_kl(y_s, y_t, temp)
    jax.block_until_ready(loss)
    ref = _reference(y_s, y_t, temp)
    assert jnp.allclose(loss, ref, rtol=1e-5, atol=1e-5), (loss, ref)

    # bf16 inputs + multi-tile grid with a ragged last tile (exercises masking
    # and the native-dtype HBM path).
    B2, C2 = 24, 128
    y_s2 = (jax.random.normal(k3, (B2, C2), dtype=jnp.float32) * 2.0).astype(jnp.bfloat16)
    y_t2 = (jax.random.normal(k4, (B2, C2), dtype=jnp.float32) * 2.0).astype(jnp.bfloat16)
    loss2 = distill_kl(y_s2, y_t2, temp, block_rows=16)
    jax.block_until_ready(loss2)
    ref2 = _reference(y_s2, y_t2, temp)
    assert jnp.allclose(loss2, ref2, rtol=1e-4, atol=1e-4), (loss2, ref2)

    # Auto tile-picker path (multi-of-16 rows for bf16, dividing tile, no mask)
    # plus the optional bf16-exp EUP path with a looser tolerance.
    B3, C3 = 64, 100
    y_s3 = (jax.random.normal(k5, (B3, C3), dtype=jnp.float32) * 2.0).astype(jnp.bfloat16)
    y_t3 = (jax.random.normal(k6, (B3, C3), dtype=jnp.float32) * 2.0).astype(jnp.bfloat16)
    loss3 = distill_kl(y_s3, y_t3, temp)
    jax.block_until_ready(loss3)
    ref3 = _reference(y_s3, y_t3, temp)
    assert jnp.allclose(loss3, ref3, rtol=1e-4, atol=1e-4), (loss3, ref3)

    loss3b = distill_kl(y_s3, y_t3, temp, bf16_exp=True)
    jax.block_until_ready(loss3b)
    assert jnp.allclose(loss3b, ref3, rtol=5e-3, atol=5e-3), (loss3b, ref3)

    print("KERNEL_OK")
</pallas_src>

<mosaic_0001>
module attributes {stable_mosaic.version = 11 : i64} {
  func.func @_distill_kl_kernel(%arg0: i32, %arg1: memref<1xf32, #tpu.memory_space<smem>>, %arg2: memref<8x32xf32, #tpu.memory_space<vmem>>, %arg3: memref<8x32xf32, #tpu.memory_space<vmem>>, %arg4: memref<1x8x128xf32, #tpu.memory_space<vmem>>) attributes {dimension_semantics = [#tpu.dimension_semantics<parallel>], iteration_bounds = array<i64: 1>, scalar_prefetch = 0 : i64, scratch_operands = 0 : i64, tpu.core_type = #tpu.core_type<tc>, window_params = [{transform_indices = @transform_0, window_bounds = array<i64: 1>}, {transform_indices = @transform_1, window_bounds = array<i64: 8, 32>}, {transform_indices = @transform_2, window_bounds = array<i64: 8, 32>}, {transform_indices = @transform_3, window_bounds = array<i64: 1, 8, 128>}]} {
    %c0 = arith.constant 0 : index
    %0 = memref.load %arg1[%c0] : memref<1xf32, #tpu.memory_space<smem>>
    %c0_0 = arith.constant 0 : index
    %c0_1 = arith.constant 0 : index
    %1 = vector.load %arg2[%c0_0, %c0_1] : memref<8x32xf32, #tpu.memory_space<vmem>>, vector<8x32xf32>
    %2 = vector.broadcast %0 : f32 to vector<8x32xf32>
    %3 = arith.mulf %1, %2 : vector<8x32xf32>
    %c0_2 = arith.constant 0 : index
    %c0_3 = arith.constant 0 : index
    %4 = vector.load %arg3[%c0_2, %c0_3] : memref<8x32xf32, #tpu.memory_space<vmem>>, vector<8x32xf32>
    %5 = vector.broadcast %0 : f32 to vector<8x32xf32>
    %6 = arith.mulf %4, %5 : vector<8x32xf32>
    %cst = arith.constant dense<0xFF800000> : vector<8xf32>
    %7 = vector.multi_reduction <maximumf>, %3, %cst [1] : vector<8x32xf32> to vector<8xf32>
    %8 = vector.shape_cast %7 : vector<8xf32> to vector<8x1xf32>
    %9 = vector.broadcast %8 : vector<8x1xf32> to vector<8x32xf32>
    %10 = arith.subf %3, %9 : vector<8x32xf32>
    %cst_4 = arith.constant dense<0xFF800000> : vector<8xf32>
    %11 = vector.multi_reduction <maximumf>, %6, %cst_4 [1] : vector<8x32xf32> to vector<8xf32>
    %12 = vector.shape_cast %11 : vector<8xf32> to vector<8x1xf32>
    %13 = vector.broadcast %12 : vector<8x1xf32> to vector<8x32xf32>
    %14 = arith.subf %6, %13 : vector<8x32xf32>
    %15 = math.exp %10 : vector<8x32xf32>
    %16 = math.exp %14 : vector<8x32xf32>
    %cst_5 = arith.constant dense<0.000000e+00> : vector<8xf32>
    %17 = vector.multi_reduction <add>, %15, %cst_5 [1] : vector<8x32xf32> to vector<8xf32>
    %18 = vector.shape_cast %17 : vector<8xf32> to vector<8x1xf32>
    %cst_6 = arith.constant dense<0.000000e+00> : vector<8xf32>
    %19 = vector.multi_reduction <add>, %16, %cst_6 [1] : vector<8x32xf32> to vector<8xf32>
    %20 = vector.shape_cast %19 : vector<8xf32> to vector<8x1xf32>
    %21 = arith.subf %14, %10 : vector<8x32xf32>
    %22 = arith.mulf %16, %21 : vector<8x32xf32>
    %cst_7 = arith.constant dense<0.000000e+00> : vector<8xf32>
    %23 = vector.multi_reduction <add>, %22, %cst_7 [1] : vector<8x32xf32> to vector<8xf32>
    %24 = vector.shape_cast %23 : vector<8xf32> to vector<8x1xf32>
    %25 = arith.divf %24, %20 : vector<8x1xf32>
    %26 = math.log %18 : vector<8x1xf32>
    %27 = arith.addf %25, %26 : vector<8x1xf32>
    %28 = math.log %20 : vector<8x1xf32>
    %29 = arith.subf %27, %28 : vector<8x1xf32>
    %30 = vector.shape_cast %29 : vector<8x1xf32> to vector<1x8x1xf32>
    %cst_8 = arith.constant dense<0.000000e+00> : vector<1xf32>
    %31 = vector.multi_reduction <add>, %30, %cst_8 [1, 2] : vector<1x8x1xf32> to vector<1xf32>
    %32 = vector.shape_cast %31 : vector<1xf32> to vector<1x1x1xf32>
    %33 = vector.extract %32[0, 0, 0] : f32 from vector<1x1x1xf32>
    %34 = vector.broadcast %33 : f32 to vector<1x8x128xf32>
    %c0_9 = arith.constant 0 : index
    %c0_10 = arith.constant 0 : index
    %c0_11 = arith.constant 0 : index
    %35 = vector.load %arg4[%c0_9, %c0_10, %c0_11] : memref<1x8x128xf32, #tpu.memory_space<vmem>>, vector<1x8x128xf32>
    tpu.vector_store %arg4[%c0_9, %c0_10, %c0_11], %34 {strides = array<i32>} : memref<1x8x128xf32, #tpu.memory_space<vmem>>, vector<1x8x128xf32>,
    return
  }
  func.func @transform_0(%arg0: i32) -> i32 {
    %c0_i32 = arith.constant 0 : i32
    %c0_i32_0 = arith.constant 0 : i32
    return %c0_i32 : i32
  }
  func.func @transform_1(%arg0: i32) -> (i32, i32) {
    %c0_i32 = arith.constant 0 : i32
    %c0_i32_0 = arith.constant 0 : i32
    return %arg0, %c0_i32 : i32, i32
  }
  func.func @transform_2(%arg0: i32) -> (i32, i32) {
    %c0_i32 = arith.constant 0 : i32
    %c0_i32_0 = arith.constant 0 : i32
    return %arg0, %c0_i32 : i32, i32
  }
  func.func @transform_3(%arg0: i32) -> (i32, i32, i32) {
    %c0_i32 = arith.constant 0 : i32
    %c0_i32_0 = arith.constant 0 : i32
    %c0_i32_1 = arith.constant 0 : i32
    return %arg0, %c0_i32, %c0_i32_0 : i32, i32, i32
  }
}

</mosaic_0001>

<llo_original>
// kernel: tpu_custom_call.1
$region0: #{tpu_custom_call.1}
  #allocation0 [shape = 'u32[]', space=smem, size = 0x4, offset = 0x4, fixed_abs, tag = 'smem constant byte address 0x4 - core index']
  #allocation1 [shape = 'u32[144,128]{1,0:T(1,128)}', space=vmem, size = 0x12000, scoped, tag = 'internal scratch']
  #allocation2 [shape = 'f32[1]{0:T(128)S(6)}', space=smem, size = 0x200, scoped, tag = 'scoped memory for tpu_custom_call.1']
  %s0 = inlined_call_operand.<no memory space> [shape: f32[1], index: 0, kind: input, shape index: {}]
  %s1 = inlined_call_operand.hbm [shape: f32[8,32], index: 1, kind: input, shape index: {}]
  %s2 = inlined_call_operand.hbm [shape: f32[8,32], index: 2, kind: input, shape index: {}]
  %s3 = inlined_call_operand.hbm [shape: f32[1,8,128], index: 3, kind: output, shape index: {}]
  %s4 = sld [smem:[#allocation0]]
  $region30: #{tpu_custom_call.1} parent=0
    _
  %s6 = ssub.s32 1, %s4
  %s7 = scalar_select 0, %s6, %s4
  %8 = sst [smem:[#allocation2]] %s0
  $region1: #{tpu_custom_call.1} parent=0
    #allocation3 [shape = 'u8[4096]{0}', space=vmem, size = 0x1000, scoped, tag = 'input window, operand 1, single buffered']
    #allocation4 [shape = 's32[1]{0}', space=sflag, size = 0x4, scoped, tag = 'scoped memory for tpu_custom_call.1']
    #allocation5 [shape = 's32[1]{0}', space=sflag, size = 0x4, scoped, tag = 'scoped memory for tpu_custom_call.1']
    #allocation6 [shape = 'u8[4096]{0}', space=vmem, size = 0x1000, scoped, tag = 'input window, operand 2, single buffered']
    #allocation7 [shape = 's32[1]{0}', space=sflag, size = 0x4, scoped, tag = 'scoped memory for tpu_custom_call.1']
    #allocation8 [shape = 'u8[4096]{0}', space=vmem, size = 0x1000, scoped, tag = 'output window, operand 0, single buffered']
    %9 = vsyncpa [#allocation4], 0
    %10 = vsyncpa [#allocation7], 0
    %11 = vsyncpa [#allocation5], 0
    // Predicated region
    $region2: #{tpu_custom_call.1} parent=1 // pred_check
      _
    $region3: #{tpu_custom_call.1} parent=1 // pred_check_branch
      %13 = sbr.rel (0) target = $region5
    $region4: #{tpu_custom_call.1} parent=1 // pred_region
      _
    $region5: #{tpu_custom_call.1} parent=1 // pred_fallthru
      _
    // Predicated region
    $region6: #{tpu_custom_call.1} parent=1 // pred_check
      _
    $region7: #{tpu_custom_call.1} parent=1 // pred_check_branch
      %15 = sbr.rel (0) target = $region9
    $region8: #{tpu_custom_call.1} parent=1 // pred_region
      %s17 = ssub.s32 128, 128
      %18 = vsyncadd [#allocation4], %s17
      %s20 = sshll.u32 [#allocation3], 4
      %s21 = int_to_ptr.vmem [resolvable:$true] %s20
      %23 = dma.hbm_to_vmem [thread:$0]  %s1, 128, %s21, [#allocation4]
    $region9: #{tpu_custom_call.1} parent=1 // pred_fallthru
      _
    // Predicated region
    $region10: #{tpu_custom_call.1} parent=1 // pred_check
      _
    $region11: #{tpu_custom_call.1} parent=1 // pred_check_branch
      %25 = sbr.rel (0) target = $region13
    $region12: #{tpu_custom_call.1} parent=1 // pred_region
      %s27 = ssub.s32 128, 128
      %28 = vsyncadd [#allocation7], %s27
      %s30 = sshll.u32 [#allocation6], 4
      %s31 = int_to_ptr.vmem [resolvable:$true] %s30
      %33 = dma.hbm_to_vmem [thread:$0]  %s2, 128, %s31, [#allocation7]
    $region13: #{tpu_custom_call.1} parent=1 // pred_fallthru
      _
    // Predicated region
    $region14: #{tpu_custom_call.1} parent=1 // pred_check
      _
    $region15: #{tpu_custom_call.1} parent=1 // pred_check_branch
      %35 = sbr.rel (0) target = $region17
    $region16: #{tpu_custom_call.1} parent=1 // pred_region
      %36 = dma.done [#allocation4], 128
    $region17: #{tpu_custom_call.1} parent=1 // pred_fallthru
      _
    // Predicated region
    $region18: #{tpu_custom_call.1} parent=1 // pred_check
      _
    $region19: #{tpu_custom_call.1} parent=1 // pred_check_branch
      %38 = sbr.rel (0) target = $region21
    $region20: #{tpu_custom_call.1} parent=1 // pred_region
      %39 = dma.done [#allocation7], 128
    $region21: #{tpu_custom_call.1} parent=1 // pred_fallthru
      _
    %s40 = sld [smem:[#allocation2]]
    %v41 = vld [vmem:[#allocation3] sm:$0xff]
    %v42 = vstv %s40
    %v43 = vmul.f32 %v41, %v42
    %v44 = vld [vmem:[#allocation6] sm:$0xff]
    %v45 = vmul.f32 %v44, %v42
    %vm46 = vcmask 261120
    %v47 = vsel %vm46, %v43, -inf
    %48 = vmax.xlane.f32.xlu0 %v47
    %v49 = vpop.xlane.xlu0 %48
    %v50 = vsub.f32 %v43, %v49
    %v51 = vsel %vm46, %v45, -inf
    %52 = vmax.xlane.f32.xlu0 %v51
    %v53 = vpop.xlane.xlu0 %52
    %v54 = vsub.f32 %v45, %v53
    %v55 = vmul.f32 %v50, 1.442695
    %v56 = vpow.pop %v55
    %v57 = vmul.f32 %v54, 1.442695
    %v58 = vpow.pop %v57
    %v59 = vsel %vm46, %v56, 0.0
    %60 = vadd.xlane.f32.xlu0 %v59
    %v61 = vpop.xlane.xlu0 %60
    %v62 = vsel %vm46, %v58, 0.0
    %63 = vadd.xlane.f32.xlu0 %v62
    %v64 = vpop.xlane.xlu0 %63
    %v65 = vsub.f32 %v54, %v50
    %v66 = vmul.f32 %v58, %v65
    %v67 = vsel %vm46, %v66, 0.0
    %68 = vadd.xlane.f32.xlu0 %v67
    %v69 = vpop.xlane.xlu0 %68
    %v70 = vrcp.pop %v64
    %v71 = vmul.f32 %v69, %v70
    %v72 = vlog2.pop %v61
    %v73 = vmul.f32 %v72, 0.6931472
    %v74 = vadd.f32 %v71, %v73
    %v75 = vlog2.pop %v64
    %v76 = vmul.f32 %v75, 0.6931472
    %v77 = vsub.f32 %v74, %v76
    %vm78 = vcmask 7168
    %v79 = vsel %vm78, %v77, 0.0
    %80 = vadd.xlane.f32.xlu0 %v79
    %v81 = vpop.xlane.xlu0 %80
    %v82 = vrot.slane %v81, 4
    %v83 = vadd.f32 %v81, %v82
    %v84 = vrot.slane %v83, 2
    %v85 = vadd.f32 %v83, %v84
    %v86 = vrot.slane %v85, 1
    %v87 = vadd.f32 %v85, %v86
    %s88 = vtos %v87
    %v89 = vstv %s88
    %90 = vst [vmem:[#allocation8] sm:$0xff] %v89
    // Predicated region
    $region22: #{tpu_custom_call.1} parent=1 // pred_check
      _
    $region23: #{tpu_custom_call.1} parent=1 // pred_check_branch
      %92 = sbr.rel (0) target = $region25
    $region24: #{tpu_custom_call.1} parent=1 // pred_region
      %s94 = ssub.s32 128, 128
      %95 = vsyncadd [#allocation5], %s94
      %s97 = sshll.u32 [#allocation8], 4
      %s98 = int_to_ptr.vmem [resolvable:$true] %s97
      %100 = dma.vmem_to_hbm [thread:$0]  %s98, 128, %s3, [#allocation5]
    $region25: #{tpu_custom_call.1} parent=1 // pred_fallthru
      _
    // Predicated region
    $region26: #{tpu_custom_call.1} parent=1 // pred_check
      _
    $region27: #{tpu_custom_call.1} parent=1 // pred_check_branch
      %102 = sbr.rel (0) target = $region29
    $region28: #{tpu_custom_call.1} parent=1 // pred_region
      %103 = dma.done [#allocation5], 128
    $region29: #{tpu_custom_call.1} parent=1 // pred_fallthru
      _
    %104 = vsyncpa [#allocation4], 1
    %105 = vsyncpa [#allocation7], 1
    %106 = vsyncpa [#allocation5], 1

</llo_original>
